<compile_context>
chip_gen: v5e
topology: v5e:2x2
jax: 0.10.0
libtpu: 0.0.40
codegen_flags: <defaults>
</compile_context>

<pallas_src>
import math

import jax
import jax.numpy as jnp
from jax.experimental import pallas as pl
from jax.experimental.pallas import tpu as pltpu


def _build_pe_buffer(d_model: int, max_len: int, init_weight: float) -> jnp.ndarray:
    """Reproduce the buffer computed in __init__ (values baked at init time,
    using the *initial* optimation_weight, exactly like register_buffer)."""
    position = jnp.arange(max_len, dtype=jnp.float32)[:, None]            # (L, 1)
    div_term = jnp.exp(
        jnp.arange(0, d_model, 2, dtype=jnp.float32) * (-math.log(10000.0) / d_model)
    )                                                                     # (D/2,)
    decay = jnp.exp(-position / 10000.0)                                  # (L, 1)
    even = jnp.sin(position * div_term) * decay * init_weight             # (L, D/2)
    odd = jnp.cos(position * div_term) * decay * (1.0 - init_weight)      # (L, D/2)
    pe = jnp.zeros((max_len, d_model), dtype=jnp.float32)
    pe = pe.at[:, 0::2].set(even)
    pe = pe.at[:, 1::2].set(odd)
    return pe                                                             # (L, D)


def _pe_add_kernel(w_ref, x_ref, pe_ref, o_ref):
    # w_ref: (1, 1) scalar in SMEM; x_ref / pe_ref / o_ref: (tR, C) tiles
    # (batch dim squeezed out via block dim None).
    o_ref[...] = x_ref[...] + pe_ref[...] * w_ref[0, 0]


_TARGET_TILE_BYTES = 2 * 1024 * 1024  # ~2 MiB per buffer -> ~12 MiB live w/ double buffering


def _pick_row_tile(n_rows: int, n_cols: int, itemsize: int) -> int:
    """Largest row tile that is a multiple of 8 and ~<= 2 MiB (or full extent)."""
    row_bytes = max(1, n_cols * itemsize)
    cap = max(8, ((_TARGET_TILE_BYTES // row_bytes) // 8) * 8)
    return n_rows if n_rows <= cap else cap


def _pe_add_tiled(x3: jnp.ndarray, pe2: jnp.ndarray, w: jnp.ndarray) -> jnp.ndarray:
    """x3: (B, R, C); pe2: (R, C).  Returns x3 + pe2[None] * w, tiled over R and B."""
    B, R, C = x3.shape
    tR = _pick_row_tile(R, C, x3.dtype.itemsize)
    grid = (pl.cdiv(R, tR), B)  # batch is the innermost (fastest) grid axis

    return pl.pallas_call(
        _pe_add_kernel,
        out_shape=jax.ShapeDtypeStruct((B, R, C), x3.dtype),
        grid_spec=pltpu.PrefetchScalarGridSpec(
            num_scalar_prefetch=0,
            grid=grid,
            in_specs=[
                pl.BlockSpec(memory_space=pltpu.SMEM),                   # w (1, 1)
                pl.BlockSpec((None, tR, C), lambda r, b: (b, r, 0)),     # x tile (batch squeezed)
                pl.BlockSpec((tR, C), lambda r, b: (r, 0)),              # pe tile, const across b
            ],
            out_specs=pl.BlockSpec((None, tR, C), lambda r, b: (b, r, 0)),
        ),
        compiler_params=pltpu.CompilerParams(
            dimension_semantics=("parallel", "parallel"),
            vmem_limit_bytes=32 * 1024 * 1024,
        ),
    )(w, x3, pe2)


def optimated_positional_encoding(x: jnp.ndarray,
                                  pe: jnp.ndarray,
                                  optimation_weight) -> jnp.ndarray:
    """x: (B, S, D) float32; pe: (max_len, D); optimation_weight: scalar param."""
    B, S, D = x.shape
    pe_slice = pe[:S, :]                                   # glue: slicing in plain JAX
    w = jnp.asarray(optimation_weight, dtype=jnp.float32).reshape(1, 1)

    if (S * D) % 128 == 0:
        # Lane-dense fast path: fold (S, D) into rows of 128 lanes.
        C = 128
        R = (S * D) // C
        out = _pe_add_tiled(x.reshape(B, R, C), pe_slice.reshape(R, C), w)
        return out.reshape(B, S, D)

    # Fallback: keep (S, D) layout (block last dim equals full D, so it is legal
    # even when D is not a multiple of 128; stores may be partially masked).
    return _pe_add_tiled(x, pe_slice, w)


if __name__ == "__main__":
    # Module config (small, consistent with forward: x is (batch, seq, d_model))
    d_model = 32
    max_len = 100
    init_weight = 0.5
    batch, seq = 2, 8

    # Deterministic "parameters"
    optimation_weight = jnp.float32(init_weight)           # nn.Parameter scalar
    pe = _build_pe_buffer(d_model, max_len, init_weight)   # registered buffer

    # Deterministic input
    key = jax.random.PRNGKey(0)
    x = jax.random.normal(key, (batch, seq, d_model), dtype=jnp.float32)

    out = optimated_positional_encoding(x, pe, optimation_weight)
    out = jax.block_until_ready(out)

    # Reference check (pure JAX) of forward semantics
    ref = x + pe[None, :seq, :] * optimation_weight
    assert out.shape == (batch, seq, d_model)
    assert jnp.allclose(out, ref, atol=1e-6), "mismatch vs reference"

    print("KERNEL_OK")
</pallas_src>

<mosaic_0001>
module attributes {stable_mosaic.version = 11 : i64} {
  func.func @_pe_add_kernel(%arg0: i32, %arg1: i32, %arg2: memref<1x1xf32, #tpu.memory_space<smem>>, %arg3: memref<1x2x128xf32, #tpu.memory_space<vmem>>, %arg4: memref<2x128xf32, #tpu.memory_space<vmem>>, %arg5: memref<1x2x128xf32, #tpu.memory_space<vmem>>) attributes {dimension_semantics = [#tpu.dimension_semantics<parallel>, #tpu.dimension_semantics<parallel>], iteration_bounds = array<i64: 1, 2>, scalar_prefetch = 0 : i64, scratch_operands = 0 : i64, tpu.core_type = #tpu.core_type<tc>, window_params = [{transform_indices = @transform_0, window_bounds = array<i64: 1, 1>}, {transform_indices = @transform_1, window_bounds = array<i64: 1, 2, 128>}, {transform_indices = @transform_2, window_bounds = array<i64: 2, 128>}, {transform_indices = @transform_3, window_bounds = array<i64: 1, 2, 128>}]} {
    %c0 = arith.constant 0 : index
    %c0_0 = arith.constant 0 : index
    %c0_1 = arith.constant 0 : index
    %0 = vector.load %arg3[%c0, %c0_0, %c0_1] : memref<1x2x128xf32, #tpu.memory_space<vmem>>, vector<1x2x128xf32>
    %1 = vector.shape_cast %0 : vector<1x2x128xf32> to vector<2x128xf32>
    %c0_2 = arith.constant 0 : index
    %c0_3 = arith.constant 0 : index
    %2 = vector.load %arg4[%c0_2, %c0_3] : memref<2x128xf32, #tpu.memory_space<vmem>>, vector<2x128xf32>
    %c0_4 = arith.constant 0 : index
    %c0_5 = arith.constant 0 : index
    %3 = memref.load %arg2[%c0_4, %c0_5] : memref<1x1xf32, #tpu.memory_space<smem>>
    %4 = vector.broadcast %3 : f32 to vector<2x128xf32>
    %5 = arith.mulf %2, %4 : vector<2x128xf32>
    %6 = arith.addf %1, %5 : vector<2x128xf32>
    %c0_6 = arith.constant 0 : index
    %c0_7 = arith.constant 0 : index
    %c0_8 = arith.constant 0 : index
    %7 = vector.load %arg5[%c0_6, %c0_7, %c0_8] : memref<1x2x128xf32, #tpu.memory_space<vmem>>, vector<1x2x128xf32>
    %8 = vector.shape_cast %7 : vector<1x2x128xf32> to vector<2x128xf32>
    %9 = vector.shape_cast %6 : vector<2x128xf32> to vector<1x2x128xf32>
    tpu.vector_store %arg5[%c0_6, %c0_7, %c0_8], %9 {strides = array<i32>} : memref<1x2x128xf32, #tpu.memory_space<vmem>>, vector<1x2x128xf32>,
    return
  }
  func.func @transform_0(%arg0: i32, %arg1: i32) -> (i32, i32) {
    %c0_i32 = arith.constant 0 : i32
    %c0_i32_0 = arith.constant 0 : i32
    %c0_i32_1 = arith.constant 0 : i32
    return %c0_i32, %c0_i32_0 : i32, i32
  }
  func.func @transform_1(%arg0: i32, %arg1: i32) -> (i32, i32, i32) {
    %c0_i32 = arith.constant 0 : i32
    %c0_i32_0 = arith.constant 0 : i32
    return %arg1, %arg0, %c0_i32 : i32, i32, i32
  }
  func.func @transform_2(%arg0: i32, %arg1: i32) -> (i32, i32) {
    %c0_i32 = arith.constant 0 : i32
    %c0_i32_0 = arith.constant 0 : i32
    return %arg0, %c0_i32 : i32, i32
  }
  func.func @transform_3(%arg0: i32, %arg1: i32) -> (i32, i32, i32) {
    %c0_i32 = arith.constant 0 : i32
    %c0_i32_0 = arith.constant 0 : i32
    return %arg1, %arg0, %c0_i32 : i32, i32, i32
  }
}

</mosaic_0001>

<llo_original>
// kernel: tpu_custom_call.1
$region0: #{tpu_custom_call.1}
  #allocation0 [shape = 'u32[]', space=smem, size = 0x4, offset = 0x4, fixed_abs, tag = 'smem constant byte address 0x4 - core index']
  #allocation1 [shape = 'u32[72,128]{1,0:T(1,128)}', space=vmem, size = 0x9000, scoped, tag = 'internal scratch']
  #allocation2 [shape = 'f32[1,1]{1,0:T(1,128)S(6)}', space=smem, size = 0x200, scoped, tag = 'scoped memory for tpu_custom_call.1']
  %s0 = inlined_call_operand.<no memory space> [shape: f32[1,1], index: 0, kind: input, shape index: {}]
  %s1 = inlined_call_operand.hbm [shape: f32[2,2,128], index: 1, kind: input, shape index: {}]
  %s2 = inlined_call_operand.vmem [shape: f32[2,128], index: 2, kind: input, shape index: {}]
  %s3 = inlined_call_operand.hbm [shape: f32[2,2,128], index: 3, kind: output, shape index: {}]
  %s4 = sld [smem:[#allocation0]]
  $region49: #{tpu_custom_call.1} parent=0
    _
  %s6 = ssub.s32 1, %s4
  %s7 = scalar_select 0, %s6, %s4
  %8 = sst [smem:[#allocation2]] %s0
  $region1: #{tpu_custom_call.1} parent=0
    #allocation3 [shape = 'u8[2048]{0}', space=vmem, size = 0x800, scoped, tag = 'input window, operand 1']
    #allocation4 [shape = 's32[2]{0}', space=sflag, size = 0x8, scoped, tag = 'scoped memory for tpu_custom_call.1']
    #allocation5 [shape = 's32[2]{0}', space=sflag, size = 0x8, scoped, tag = 'scoped memory for tpu_custom_call.1']
    #allocation6 [shape = 'u8[2048]{0}', space=vmem, size = 0x800, scoped, tag = 'output window, operand 0']
    %9 = vsyncpa [#allocation4], 0
    %s10 = scalar_lea.sflag [#allocation4], 1
    %11 = vsyncpa %s10, 0
    %12 = vsyncpa [#allocation5], 0
    %s13 = scalar_lea.sflag [#allocation5], 1
    %14 = vsyncpa %s13, 0
    loop: start=0, step=1, limit=4
    $region2: #{tpu_custom_call.1} parent=1 // loop_pre_header
      _
    $region3: #{tpu_custom_call.1} parent=1 // loop_header
      %s16 = sphi 0, %s20
      %p17 = scmp.ge.s32.totalorder %s16, 4
      %s23 = sphi 0, %s35
      %s24 = sphi 0, %s31
      %s25 = sphi 0, %s23
      %s26 = sphi 0, %s24
      %s27 = sphi 0, %s25
      %s28 = sphi 0, %s26
      %s36 = sphi 0, %s36
      %s38 = sphi 0, %s36
      %s39 = sphi 0, %s38
      %s53 = sphi 0, %s39
      %s61 = sphi 0, %s63
      %s64 = sphi 0, %s61
      %s65 = sphi 0, %s64
      %s81 = sphi 0, %s65
      %s87 = sphi 0, %s89
      %s90 = sphi 0, %s87
      %s91 = sphi 0, %s90
      %s107 = sphi 0, %s91
      %s115 = sphi 0, %s117
      %s118 = sphi 0, %s115
      %s119 = sphi 0, %s118
      %s135 = sphi 0, %s119
    $region4: #{tpu_custom_call.1} parent=1 // loop_header_branch
      %19 = sbr.rel (%p17) target = $region8
    $region5: #{tpu_custom_call.1} parent=1 // loop_body
      %s21 = ssub.s32 %s16, 1
      %s22 = ssub.s32 %s16, 2
      %s29 = sadd.s32 1, %s24
      %p30 = scmp.ge.s32.totalorder %s29, 2
      %s31 = scalar_select %p30, 0, %s29
      %s32 = sadd.s32 1, %s23
      %s33 = scalar_select %p30, %s32, %s23
      %p34 = scmp.ge.s32.totalorder %s33, 1
      %s35 = scalar_select %p34, 0, %s33
      %s37 = sadd.s32 %s36, 1
      %p40 = scmp.eq.s32.totalorder %s16, 1
      %p41 = scmp.ne.s32.totalorder %s36, %s38
      %p42 = scmp.eq.s32.totalorder %s16, 0
      %p43 = por %p41, %p42
      %p44 = scmp.ne.s32.totalorder %s36, %s38
      %p45 = scmp.eq.s32.totalorder %s21, 1
      %p46 = por %p44, %p45
      %p47 = scmp.ne.s32.totalorder %s38, %s39
      %p48 = scmp.eq.s32.totalorder %s21, 0
      %p49 = por %p47, %p48
      %p50 = scmp.ne.s32.totalorder %s38, %s39
      %p51 = scmp.eq.s32.totalorder %s22, 1
      %p52 = por %p50, %p51
      %p54 = scmp.ne.s32.totalorder %s39, %s53
      %p55 = scmp.eq.s32.totalorder %s22, 0
      %p56 = por %p54, %p55
      %s57 = ssub.s32 %s24, %s31
      %s58 = ssub.s32 %s23, %s35
      %s59 = sor.u32 %s57, %s58
      %p60 = scmp.eq.s32.totalorder %s59, 0
      %s62 = sadd.s32 %s61, 1
      %s63 = scalar_select %p60, %s61, %s62
      %p66 = pneg %p60
      %p67 = scmp.eq.s32.totalorder %s16, 1
      %p68 = por %p66, %p67
      %p69 = scmp.ne.s32.totalorder %s61, %s64
      %p70 = scmp.eq.s32.totalorder %s16, 0
      %p71 = por %p69, %p70
      %p72 = scmp.ne.s32.totalorder %s61, %s64
      %p73 = scmp.eq.s32.totalorder %s21, 1
      %p74 = por %p72, %p73
      %p75 = scmp.ne.s32.totalorder %s64, %s65
      %p76 = scmp.eq.s32.totalorder %s21, 0
      %p77 = por %p75, %p76
      %p78 = scmp.ne.s32.totalorder %s64, %s65
      %p79 = scmp.eq.s32.totalorder %s22, 1
      %p80 = por %p78, %p79
      %p82 = scmp.ne.s32.totalorder %s65, %s81
      %p83 = scmp.eq.s32.totalorder %s22, 0
      %p84 = por %p82, %p83
      %s85 = ssub.s32 %s23, %s35
      %p86 = scmp.eq.s32.totalorder %s85, 0
      %s88 = sadd.s32 %s87, 1
      %s89 = scalar_select %p86, %s87, %s88
      %p92 = pneg %p86
      %p93 = scmp.eq.s32.totalorder %s16, 1
      %p94 = por %p92, %p93
      %p95 = scmp.ne.s32.totalorder %s87, %s90
      %p96 = scmp.eq.s32.totalorder %s16, 0
      %p97 = por %p95, %p96
      %p98 = scmp.ne.s32.totalorder %s87, %s90
      %p99 = scmp.eq.s32.totalorder %s21, 1
      %p100 = por %p98, %p99
      %p101 = scmp.ne.s32.totalorder %s90, %s91
      %p102 = scmp.eq.s32.totalorder %s21, 0
      %p103 = por %p101, %p102
      %p104 = scmp.ne.s32.totalorder %s90, %s91
      %p105 = scmp.eq.s32.totalorder %s22, 1
      %p106 = por %p104, %p105
      %p108 = scmp.ne.s32.totalorder %s91, %s107
      %p109 = scmp.eq.s32.totalorder %s22, 0
      %p110 = por %p108, %p109
      %s111 = ssub.s32 %s24, %s31
      %s112 = ssub.s32 %s23, %s35
      %s113 = sor.u32 %s111, %s112
      %p114 = scmp.eq.s32.totalorder %s113, 0
      %s116 = sadd.s32 %s115, 1
      %s117 = scalar_select %p114, %s115, %s116
      %p120 = pneg %p114
      %p121 = scmp.eq.s32.totalorder %s16, 1
      %p122 = por %p120, %p121
      %p123 = scmp.ne.s32.totalorder %s115, %s118
      %p124 = scmp.eq.s32.totalorder %s16, 0
      %p125 = por %p123, %p124
      %p126 = scmp.ne.s32.totalorder %s115, %s118
      %p127 = scmp.eq.s32.totalorder %s21, 1
      %p128 = por %p126, %p127
      %p129 = scmp.ne.s32.totalorder %s118, %s119
      %p130 = scmp.eq.s32.totalorder %s21, 0
      %p131 = por %p129, %p130
      %p132 = scmp.ne.s32.totalorder %s118, %s119
      %p133 = scmp.eq.s32.totalorder %s22, 1
      %p134 = por %p132, %p133
      %p136 = scmp.ne.s32.totalorder %s119, %s135
      %p137 = scmp.eq.s32.totalorder %s22, 0
      %p138 = por %p136, %p137
      %p139 = scmp.le.s32.totalorder 1, %s16
      %p140 = scmp.lt.s32.totalorder %s16, 3
      %p141 = pnand %p139, %p140
      %p142 = pneg %p141
      // Predicated region
      $region9: #{tpu_custom_call.1} parent=5 // pred_check
        _
      $region10: #{tpu_custom_call.1} parent=5 // pred_check_branch
        %144 = sbr.rel (%p141) target = $region12
      $region11: #{tpu_custom_call.1} parent=5 // pred_region
        %s145 = ssub.s32 %s16, 1
        // Predicated region
        $region13: #{tpu_custom_call.1} parent=11 // pred_check
          %p146 = pneg %p49
        $region14: #{tpu_custom_call.1} parent=11 // pred_check_branch
          %148 = sbr.rel (%p146) target = $region16
        $region15: #{tpu_custom_call.1} parent=11 // pred_region
          _
        $region16: #{tpu_custom_call.1} parent=11 // pred_fallthru
          _
        // Predicated region
        $region17: #{tpu_custom_call.1} parent=11 // pred_check
          %p149 = pneg %p103
        $region18: #{tpu_custom_call.1} parent=11 // pred_check_branch
          %151 = sbr.rel (%p149) target = $region20
        $region19: #{tpu_custom_call.1} parent=11 // pred_region
          %p152 = scmp.lt.s32.totalorder %s25, 0
          %s153 = scalar_select %p152, %s25, 0
          %s154 = smul.addr %s153, 2
          %s155 = scalar_lea.vmem %s2, %s154
        $region20: #{tpu_custom_call.1} parent=11 // pred_fallthru
          _
      $region12: #{tpu_custom_call.1} parent=5 // pred_fallthru
        _
      %p156 = scmp.lt.s32.totalorder %s16, 2
      // Predicated region
      $region21: #{tpu_custom_call.1} parent=5 // pred_check
        %p157 = pneg %p156
      $region22: #{tpu_custom_call.1} parent=5 // pred_check_branch
        %159 = sbr.rel (%p157) target = $region24
      $region23: #{tpu_custom_call.1} parent=5 // pred_region
        // Predicated region
        $region25: #{tpu_custom_call.1} parent=23 // pred_check
          %p160 = pneg %p71
        $region26: #{tpu_custom_call.1} parent=23 // pred_check_branch
          %162 = sbr.rel (%p160) target = $region28
        $region27: #{tpu_custom_call.1} parent=23 // pred_region
          %s163 = sand.u32 %s61, 1
          %s164 = scalar_lea.sflag [#allocation4], %s163
          %s165 = sand.u32 %s61, 1
          %s166 = smul.addr %s165, 2
          %s167 = scalar_lea.vmem [#allocation3], %s166
          %169 = vsyncadd %s164, 0
          %s170 = sadd.s32 %s23, %s24
          %s171 = smul.addr %s170, 2
          %s172 = scalar_lea.hbm %s1, %s171
          %s174 = sshll.u32 %s172, 4
          %s175 = int_to_ptr.hbm [resolvable:$true] %s174
          %s176 = sshll.u32 %s167, 4
          %s177 = int_to_ptr.vmem [resolvable:$true] %s176
          %179 = dma.hbm_to_vmem [thread:$0]  %s175, 32, %s177, %s164
        $region28: #{tpu_custom_call.1} parent=23 // pred_fallthru
          _
      $region24: #{tpu_custom_call.1} parent=5 // pred_fallthru
        _
      %p180 = scmp.le.s32.totalorder 1, %s16
      %p181 = scmp.lt.s32.totalorder %s16, 3
      %p182 = pnand %p180, %p181
      %p183 = pneg %p182
      // Predicated region
      $region29: #{tpu_custom_call.1} parent=5 // pred_check
        _
      $region30: #{tpu_custom_call.1} parent=5 // pred_check_branch
        %185 = sbr.rel (%p182) target = $region32
      $region31: #{tpu_custom_call.1} parent=5 // pred_region
        %s186 = ssub.s32 %s16, 1
        %s187 = sand.u32 %s64, 1
        %s188 = scalar_lea.sflag [#allocation4], %s187
        %s189 = sand.u32 %s64, 1
        %s190 = smul.addr %s189, 2
        %s191 = scalar_lea.vmem [#allocation3], %s190
        // Predicated region
        $region33: #{tpu_custom_call.1} parent=31 // pred_check
          %p192 = pneg %p77
        $region34: #{tpu_custom_call.1} parent=31 // pred_check_branch
          %194 = sbr.rel (%p192) target = $region36
        $region35: #{tpu_custom_call.1} parent=31 // pred_region
          %196 = dma.done %s188, 32
        $region36: #{tpu_custom_call.1} parent=31 // pred_fallthru
          _
        %p197 = pneg %p49
        %p198 = pneg %p46
        %s199 = sand.u32 %s64, 1
        %s200 = scalar_lea.sflag [#allocation4], %s199
        %s201 = sand.u32 %s64, 1
        %s202 = smul.addr %s201, 2
        %s203 = scalar_lea.vmem [#allocation3], %s202
        %p204 = pneg %p77
        %p205 = pneg %p74
        %p206 = scmp.lt.s32.totalorder %s25, 0
        %s207 = scalar_select %p206, %s25, 0
        %s208 = smul.addr %s207, 2
        %s209 = scalar_lea.vmem %s2, %s208
        %p210 = pneg %p103
        %p211 = pneg %p100
        %p212 = pneg %p131
        %p213 = pneg %p128
        %s214 = sand.u32 %s118, 1
        %s215 = scalar_lea.sflag [#allocation5], %s214
        %s216 = sand.u32 %s118, 1
        %s217 = smul.addr %s216, 2
        %s218 = scalar_lea.vmem [#allocation6], %s217
        %p219 = scmp.lt.s32.totalorder %s25, 0
        %s220 = scalar_select %p219, %s25, 0
        %s221 = smul.addr %s220, 2
        %s222 = scalar_lea.vmem %s2, %s221
        %v223 = vld [vmem:[%s191] sm:$0x3]
        %v224 = vld [vmem:[%s222] sm:$0x3]
        %s225 = sld [smem:[#allocation2]]
        %v226 = vstv %s225
        %v227 = vmul.f32 %v224, %v226
        %v228 = vadd.f32 %v223, %v227
        %229 = vst [vmem:[%s218] sm:$0x3] %v228
        %s230 = sand.u32 %s118, 1
        %s231 = scalar_lea.sflag [#allocation5], %s230
        %s232 = sand.u32 %s118, 1
        %s233 = smul.addr %s232, 2
        %s234 = scalar_lea.vmem [#allocation6], %s233
        // Predicated region
        $region37: #{tpu_custom_call.1} parent=31 // pred_check
          %p235 = pneg %p128
        $region38: #{tpu_custom_call.1} parent=31 // pred_check_branch
          %237 = sbr.rel (%p235) target = $region40
        $region39: #{tpu_custom_call.1} parent=31 // pred_region
          %239 = vsyncadd %s231, 0
          %s240 = sadd.s32 %s25, %s26
          %s241 = smul.addr %s240, 2
          %s242 = scalar_lea.hbm %s3, %s241
          %s244 = sshll.u32 %s234, 4
          %s245 = int_to_ptr.vmem [resolvable:$true] %s244
          %s246 = sshll.u32 %s242, 4
          %s247 = int_to_ptr.hbm [resolvable:$true] %s246
          %249 = dma.vmem_to_hbm [thread:$0]  %s245, 32, %s247, %s231
        $region40: #{tpu_custom_call.1} parent=31 // pred_fallthru
          _
      $region32: #{tpu_custom_call.1} parent=5 // pred_fallthru
        _
      %p250 = scmp.le.s32.totalorder 2, %s16
      // Predicated region
      $region41: #{tpu_custom_call.1} parent=5 // pred_check
        %p251 = pneg %p250
      $region42: #{tpu_custom_call.1} parent=5 // pred_check_branch
        %253 = sbr.rel (%p251) target = $region44
      $region43: #{tpu_custom_call.1} parent=5 // pred_region
        %s254 = ssub.s32 %s16, 2
        // Predicated region
        $region45: #{tpu_custom_call.1} parent=43 // pred_check
          %p255 = pneg %p134
        $region46: #{tpu_custom_call.1} parent=43 // pred_check_branch
          %257 = sbr.rel (%p255) target = $region48
        $region47: #{tpu_custom_call.1} parent=43 // pred_region
          %s258 = sand.u32 %s119, 1
          %s259 = scalar_lea.sflag [#allocation5], %s258
          %s260 = sand.u32 %s119, 1
          %s261 = smul.addr %s260, 2
          %s262 = scalar_lea.vmem [#allocation6], %s261
          %264 = dma.done %s259, 32
        $region48: #{tpu_custom_call.1} parent=43 // pred_fallthru
          _
      $region44: #{tpu_custom_call.1} parent=5 // pred_fallthru
        _
    $region6: #{tpu_custom_call.1} parent=1 // loop_footer
      %s20 = sadd.s32 1, %s16
    $region7: #{tpu_custom_call.1} parent=1 // loop_footer_branch
      %15 = sbr.rel target = $region3
    $region8: #{tpu_custom_call.1} parent=1 // loop_exit
      _
    %265 = vsyncpa [#allocation4], 1
    %s266 = scalar_lea.sflag [#allocation4], 1
    %267 = vsyncpa %s266, 1
    %268 = vsyncpa [#allocation5], 1
    %s269 = scalar_lea.sflag [#allocation5], 1
    %270 = vsyncpa %s269, 1

</llo_original>
